<compile_context>
chip_gen: v6e
topology: v6e:2x2x1
jax: 0.10.0
libtpu: 0.0.40
codegen_flags: <defaults>
</compile_context>

<pallas_src>
import functools

import jax
import jax.numpy as jnp
from jax.experimental import pallas as pl
from jax.experimental.pallas import tpu as pltpu


def _bgr_hsv_kernel(x_ref, o_ref, *, eps):
    """x_ref/o_ref: (1, 3, TH, L) blocks; the size-3 axis holds (B, G, R)."""
    b = x_ref[0, 0, :, :]
    g = x_ref[0, 1, :, :]
    r = x_ref[0, 2, :, :]

    mx = jnp.maximum(jnp.maximum(r, g), b)
    mn = jnp.minimum(jnp.minimum(r, g), b)

    # Shared reciprocal with the trailing `hue / 6` folded in (one fewer full-tile mul).
    inv6 = (1.0 / 6.0) / (mx - mn + eps)

    # Replicate the masked-assignment override order of the PyTorch forward:
    #   1) B == max  -> 4 + (R - G)/d
    #   2) G == max  -> 2 + (B - R)/d          (overrides 1)
    #   3) R == max  -> ((G - B)/d) % 6        (overrides 1, 2)
    #   4) min==max  -> 0                      (overrides all)
    hue = (4.0 / 6.0) + (r - g) * inv6
    hue = jnp.where(g == mx, (2.0 / 6.0) + (b - r) * inv6, hue)
    t = (g - b) * inv6                      # in (-1/6, 1/6) when r == mx, so `% 1` == cond +1
    hue = jnp.where(r == mx, jnp.where(t < 0.0, t + 1.0, t), hue)
    hue = jnp.where(mn == mx, 0.0, hue)

    sat = (mx - mn) / (mx + eps)
    sat = jnp.where(mx == 0.0, 0.0, sat)

    o_ref[0, 0, :, :] = hue
    o_ref[0, 1, :, :] = sat
    o_ref[0, 2, :, :] = mx


_LANE_CANDIDATES = (2048, 1024, 512, 256, 128)


def _vmem_capacity_bytes():
    try:
        return int(pltpu.get_tpu_info().vmem_capacity_bytes)
    except Exception:
        return 64 << 20  # smallest per-TensorCore VMEM across v5e/v6e/v7x


def _choose_pixel_view(H, W):
    """Pick a lane-dense 2D (rows, lanes) view of the flattened H*W pixel axis."""
    n_pix = H * W
    divisors = [L for L in _LANE_CANDIDATES if n_pix % L == 0]
    if divisors:
        full = [L for L in divisors if n_pix // L >= 8]  # full sublane occupancy if possible
        L = full[0] if full else divisors[-1]
        return n_pix // L, L
    return H, W  # fallback: natural spatial view (W is the full-extent lane dim)


def _choose_row_tile(R, L, budget_bytes, min_row_tiles):
    """Rows per block: multiple of 8, fits the VMEM budget, >= min_row_tiles blocks."""
    if R <= 8:
        return R
    # Bytes pipelined per block row: (in + out) x 3 channels x L lanes x 4 B, double-buffered.
    bytes_per_row = 2 * 2 * 3 * L * 4
    th_cap = max(8, (budget_bytes // bytes_per_row) // 8 * 8)
    n_tiles = max(min_row_tiles, pl.cdiv(R, th_cap))
    n_tiles = min(n_tiles, pl.cdiv(R, 8))       # never shrink a tile below 8 rows
    th = pl.cdiv(pl.cdiv(R, n_tiles), 8) * 8    # round up to a sublane multiple
    return min(th, th_cap)


def bgr_to_hsv(img_bgr, eps=1e-8):
    """img_bgr: (B, 3, H, W) float32 BGR in [0, 1). Returns HSV, same shape/dtype."""
    B, C, H, W = img_bgr.shape
    assert C == 3, "expected 3-channel BGR input"

    R, L = _choose_pixel_view(H, W)
    x = img_bgr.reshape(B, 3, R, L)             # contiguous view; free, no relayout

    cap = _vmem_capacity_bytes()
    budget = min(cap // 4, 32 << 20)            # generation-aware block budget (~2-8 MiB real data)
    min_row_tiles = max(2, pl.cdiv(8, B))       # keep v7x's 2 TCs busy / pipelining active
    TH = _choose_row_tile(R, L, budget, min_row_tiles)

    block = (1, 3, TH, L)
    grid = (B, pl.cdiv(R, TH))

    # Cover 2 buffers x (in block + out block) plus headroom, bounded by physical VMEM.
    vmem_limit = int(min(max(32 << 20, 2 * 2 * 3 * TH * L * 4 + (8 << 20)), cap // 2))

    out = pl.pallas_call(
        functools.partial(_bgr_hsv_kernel, eps=eps),
        out_shape=jax.ShapeDtypeStruct((B, 3, R, L), img_bgr.dtype),
        grid=grid,
        in_specs=[pl.BlockSpec(block, lambda bi, ri: (bi, 0, ri, 0))],
        out_specs=pl.BlockSpec(block, lambda bi, ri: (bi, 0, ri, 0)),
        compiler_params=pltpu.CompilerParams(
            dimension_semantics=("parallel", "parallel"),
            vmem_limit_bytes=vmem_limit,
        ),
    )(x)

    return out.reshape(B, 3, H, W)


def _reference_bgr_to_hsv(img_bgr, eps=1e-8):
    """Pure-JAX reference mirroring the PyTorch forward semantics exactly."""
    img = img_bgr[:, ::-1, :, :]        # BGR -> RGB
    r, g, b = img[:, 0], img[:, 1], img[:, 2]
    mx = jnp.max(img, axis=1)
    mn = jnp.min(img, axis=1)
    denom = mx - mn + eps
    hue = 4.0 + (r - g) / denom
    hue = jnp.where(g == mx, 2.0 + (b - r) / denom, hue)
    hue = jnp.where(r == mx, jnp.mod((g - b) / denom, 6.0), hue)
    hue = jnp.where(mn == mx, 0.0, hue)
    hue = hue / 6.0
    sat = (mx - mn) / (mx + eps)
    sat = jnp.where(mx == 0.0, 0.0, sat)
    return jnp.stack([hue, sat, mx], axis=1)


if __name__ == "__main__":
    key = jax.random.PRNGKey(0)
    k0, k1, k2 = jax.random.split(key, 3)

    # Small NCHW BGR image (B, 3, H, W), values in [0, 1).
    img = jax.random.uniform(k0, (2, 3, 16, 16), dtype=jnp.float32)
    hsv = jax.block_until_ready(bgr_to_hsv(img))
    assert hsv.shape == img.shape
    assert jnp.allclose(hsv, _reference_bgr_to_hsv(img), atol=1e-5, rtol=1e-5)

    # Exercises the lane-dense (rows, 2048) pixel view and a multi-tile pixel grid
    # (>= 2 "parallel" steps so both v7x TensorCores would get work).
    img2 = jax.random.uniform(k1, (1, 3, 256, 128), dtype=jnp.float32)
    hsv2 = jax.block_until_ready(bgr_to_hsv(img2))
    assert jnp.allclose(hsv2, _reference_bgr_to_hsv(img2), atol=1e-5, rtol=1e-5)

    # Pixel count with no 128-multiple factorisation: falls back to the (H, W) view.
    img3 = jax.random.uniform(k2, (1, 3, 24, 40), dtype=jnp.float32)
    hsv3 = jax.block_until_ready(bgr_to_hsv(img3))
    assert jnp.allclose(hsv3, _reference_bgr_to_hsv(img3), atol=1e-5, rtol=1e-5)

    print("KERNEL_OK")
</pallas_src>

<mosaic_0001>
module attributes {stable_mosaic.version = 11 : i64} {
  func.func @_bgr_hsv_kernel(%arg0: i32, %arg1: i32, %arg2: memref<1x3x2x128xf32, #tpu.memory_space<vmem>>, %arg3: memref<1x3x2x128xf32, #tpu.memory_space<vmem>>) attributes {dimension_semantics = [#tpu.dimension_semantics<parallel>, #tpu.dimension_semantics<parallel>], iteration_bounds = array<i64: 2, 1>, scalar_prefetch = 0 : i64, scratch_operands = 0 : i64, tpu.core_type = #tpu.core_type<tc>, window_params = [{transform_indices = @transform_0, window_bounds = array<i64: 1, 3, 2, 128>}, {transform_indices = @transform_1, window_bounds = array<i64: 1, 3, 2, 128>}]} {
    %c0 = arith.constant 0 : index
    %c0_0 = arith.constant 0 : index
    %c0_1 = arith.constant 0 : index
    %c0_2 = arith.constant 0 : index
    %0 = vector.load %arg2[%c0, %c0_0, %c0_1, %c0_2] : memref<1x3x2x128xf32, #tpu.memory_space<vmem>>, vector<1x1x2x128xf32>
    %1 = vector.shape_cast %0 : vector<1x1x2x128xf32> to vector<2x128xf32>
    %c0_3 = arith.constant 0 : index
    %c1 = arith.constant 1 : index
    %c0_4 = arith.constant 0 : index
    %c0_5 = arith.constant 0 : index
    %2 = vector.load %arg2[%c0_3, %c1, %c0_4, %c0_5] : memref<1x3x2x128xf32, #tpu.memory_space<vmem>>, vector<1x1x2x128xf32>
    %3 = vector.shape_cast %2 : vector<1x1x2x128xf32> to vector<2x128xf32>
    %c0_6 = arith.constant 0 : index
    %c2 = arith.constant 2 : index
    %c0_7 = arith.constant 0 : index
    %c0_8 = arith.constant 0 : index
    %4 = vector.load %arg2[%c0_6, %c2, %c0_7, %c0_8] : memref<1x3x2x128xf32, #tpu.memory_space<vmem>>, vector<1x1x2x128xf32>
    %5 = vector.shape_cast %4 : vector<1x1x2x128xf32> to vector<2x128xf32>
    %6 = arith.maximumf %5, %3 : vector<2x128xf32>
    %7 = arith.maximumf %6, %1 : vector<2x128xf32>
    %8 = arith.minimumf %5, %3 : vector<2x128xf32>
    %9 = arith.minimumf %8, %1 : vector<2x128xf32>
    %10 = arith.subf %7, %9 : vector<2x128xf32>
    %cst = arith.constant 9.99999993E-9 : f32
    %11 = vector.broadcast %cst : f32 to vector<2x128xf32>
    %12 = arith.addf %10, %11 : vector<2x128xf32>
    %cst_9 = arith.constant 0.166666672 : f32
    %13 = vector.broadcast %cst_9 : f32 to vector<2x128xf32>
    %14 = arith.divf %13, %12 : vector<2x128xf32>
    %15 = arith.subf %5, %3 : vector<2x128xf32>
    %16 = arith.mulf %15, %14 : vector<2x128xf32>
    %cst_10 = arith.constant 0.666666686 : f32
    %17 = vector.broadcast %cst_10 : f32 to vector<2x128xf32>
    %18 = arith.addf %17, %16 : vector<2x128xf32>
    %19 = arith.cmpf oeq, %3, %7 : vector<2x128xf32>
    %20 = arith.subf %1, %5 : vector<2x128xf32>
    %21 = arith.mulf %20, %14 : vector<2x128xf32>
    %cst_11 = arith.constant 0.333333343 : f32
    %22 = vector.broadcast %cst_11 : f32 to vector<2x128xf32>
    %23 = arith.addf %22, %21 : vector<2x128xf32>
    %24 = arith.select %19, %23, %18 : vector<2x128xi1>, vector<2x128xf32>
    %25 = arith.subf %3, %1 : vector<2x128xf32>
    %26 = arith.mulf %25, %14 : vector<2x128xf32>
    %27 = arith.cmpf oeq, %5, %7 : vector<2x128xf32>
    %cst_12 = arith.constant 0.000000e+00 : f32
    %28 = vector.broadcast %cst_12 : f32 to vector<2x128xf32>
    %29 = arith.cmpf olt, %26, %28 : vector<2x128xf32>
    %cst_13 = arith.constant 1.000000e+00 : f32
    %30 = vector.broadcast %cst_13 : f32 to vector<2x128xf32>
    %31 = arith.addf %26, %30 : vector<2x128xf32>
    %32 = arith.select %29, %31, %26 : vector<2x128xi1>, vector<2x128xf32>
    %33 = arith.select %27, %32, %24 : vector<2x128xi1>, vector<2x128xf32>
    %34 = arith.cmpf oeq, %9, %7 : vector<2x128xf32>
    %cst_14 = arith.constant 0.000000e+00 : f32
    %35 = vector.broadcast %cst_14 : f32 to vector<2x128xf32>
    %36 = arith.select %34, %35, %33 : vector<2x128xi1>, vector<2x128xf32>
    %37 = arith.subf %7, %9 : vector<2x128xf32>
    %cst_15 = arith.constant 9.99999993E-9 : f32
    %38 = vector.broadcast %cst_15 : f32 to vector<2x128xf32>
    %39 = arith.addf %7, %38 : vector<2x128xf32>
    %40 = arith.divf %37, %39 : vector<2x128xf32>
    %cst_16 = arith.constant 0.000000e+00 : f32
    %41 = vector.broadcast %cst_16 : f32 to vector<2x128xf32>
    %42 = arith.cmpf oeq, %7, %41 : vector<2x128xf32>
    %cst_17 = arith.constant 0.000000e+00 : f32
    %43 = vector.broadcast %cst_17 : f32 to vector<2x128xf32>
    %44 = arith.select %42, %43, %40 : vector<2x128xi1>, vector<2x128xf32>
    %c0_18 = arith.constant 0 : index
    %c0_19 = arith.constant 0 : index
    %c0_20 = arith.constant 0 : index
    %c0_21 = arith.constant 0 : index
    %45 = vector.load %arg3[%c0_18, %c0_19, %c0_20, %c0_21] : memref<1x3x2x128xf32, #tpu.memory_space<vmem>>, vector<1x1x2x128xf32>
    %46 = vector.shape_cast %45 : vector<1x1x2x128xf32> to vector<2x128xf32>
    %47 = vector.shape_cast %36 : vector<2x128xf32> to vector<1x1x2x128xf32>
    tpu.vector_store %arg3[%c0_18, %c0_19, %c0_20, %c0_21], %47 {strides = array<i32>} : memref<1x3x2x128xf32, #tpu.memory_space<vmem>>, vector<1x1x2x128xf32>,
    %c0_22 = arith.constant 0 : index
    %c1_23 = arith.constant 1 : index
    %c0_24 = arith.constant 0 : index
    %c0_25 = arith.constant 0 : index
    %48 = vector.load %arg3[%c0_22, %c1_23, %c0_24, %c0_25] : memref<1x3x2x128xf32, #tpu.memory_space<vmem>>, vector<1x1x2x128xf32>
    %49 = vector.shape_cast %48 : vector<1x1x2x128xf32> to vector<2x128xf32>
    %50 = vector.shape_cast %44 : vector<2x128xf32> to vector<1x1x2x128xf32>
    tpu.vector_store %arg3[%c0_22, %c1_23, %c0_24, %c0_25], %50 {strides = array<i32>} : memref<1x3x2x128xf32, #tpu.memory_space<vmem>>, vector<1x1x2x128xf32>,
    %c0_26 = arith.constant 0 : index
    %c2_27 = arith.constant 2 : index
    %c0_28 = arith.constant 0 : index
    %c0_29 = arith.constant 0 : index
    %51 = vector.load %arg3[%c0_26, %c2_27, %c0_28, %c0_29] : memref<1x3x2x128xf32, #tpu.memory_space<vmem>>, vector<1x1x2x128xf32>
    %52 = vector.shape_cast %51 : vector<1x1x2x128xf32> to vector<2x128xf32>
    %53 = vector.shape_cast %7 : vector<2x128xf32> to vector<1x1x2x128xf32>
    tpu.vector_store %arg3[%c0_26, %c2_27, %c0_28, %c0_29], %53 {strides = array<i32>} : memref<1x3x2x128xf32, #tpu.memory_space<vmem>>, vector<1x1x2x128xf32>,
    return
  }
  func.func @transform_0(%arg0: i32, %arg1: i32) -> (i32, i32, i32, i32) {
    %c0_i32 = arith.constant 0 : i32
    %c0_i32_0 = arith.constant 0 : i32
    %c0_i32_1 = arith.constant 0 : i32
    return %arg0, %c0_i32, %arg1, %c0_i32_0 : i32, i32, i32, i32
  }
  func.func @transform_1(%arg0: i32, %arg1: i32) -> (i32, i32, i32, i32) {
    %c0_i32 = arith.constant 0 : i32
    %c0_i32_0 = arith.constant 0 : i32
    %c0_i32_1 = arith.constant 0 : i32
    return %arg0, %c0_i32, %arg1, %c0_i32_0 : i32, i32, i32, i32
  }
}

</mosaic_0001>

<llo_original>
// kernel: tpu_custom_call.1
$region0: #{tpu_custom_call.1}
  #allocation0 [shape = 'u32[]', space=smem, size = 0x4, offset = 0x4, fixed_abs, tag = 'smem constant byte address 0x4 - core index']
  #allocation1 [shape = 'u32[144,128]{1,0:T(1,128)}', space=vmem, size = 0x12000, scoped, tag = 'internal scratch']
  %s0 = inlined_call_operand.hbm [shape: f32[2,3,2,128], index: 0, kind: input, shape index: {}]
  %s1 = inlined_call_operand.hbm [shape: f32[2,3,2,128], index: 1, kind: output, shape index: {}]
  %s2 = sld [smem:[#allocation0]]
  $region41: #{tpu_custom_call.1} parent=0
    _
  %s4 = ssub.s32 1, %s2
  %s5 = scalar_select 0, %s4, %s2
  $region1: #{tpu_custom_call.1} parent=0
    #allocation2 [shape = 'u8[6144]{0}', space=vmem, size = 0x1800, scoped, tag = 'input window, operand 0']
    #allocation3 [shape = 's32[2]{0}', space=sflag, size = 0x8, scoped, tag = 'scoped memory for tpu_custom_call.1']
    #allocation4 [shape = 's32[2]{0}', space=sflag, size = 0x8, scoped, tag = 'scoped memory for tpu_custom_call.1']
    #allocation5 [shape = 'u8[6144]{0}', space=vmem, size = 0x1800, scoped, tag = 'output window, operand 0']
    %6 = vsyncpa [#allocation3], 0
    %s7 = scalar_lea.sflag [#allocation3], 1
    %8 = vsyncpa %s7, 0
    %9 = vsyncpa [#allocation4], 0
    %s10 = scalar_lea.sflag [#allocation4], 1
    %11 = vsyncpa %s10, 0
    loop: start=0, step=1, limit=4
    $region2: #{tpu_custom_call.1} parent=1 // loop_pre_header
      _
    $region3: #{tpu_custom_call.1} parent=1 // loop_header
      %s13 = sphi 0, %s17
      %p14 = scmp.ge.s32.totalorder %s13, 4
      %s20 = sphi 0, %s32
      %s21 = sphi 0, %s28
      %s22 = sphi 0, %s20
      %s23 = sphi 0, %s21
      %s24 = sphi 0, %s22
      %s25 = sphi 0, %s23
      %s37 = sphi 0, %s39
      %s40 = sphi 0, %s37
      %s41 = sphi 0, %s40
      %s57 = sphi 0, %s41
      %s65 = sphi 0, %s67
      %s68 = sphi 0, %s65
      %s69 = sphi 0, %s68
      %s85 = sphi 0, %s69
    $region4: #{tpu_custom_call.1} parent=1 // loop_header_branch
      %16 = sbr.rel (%p14) target = $region8
    $region5: #{tpu_custom_call.1} parent=1 // loop_body
      %s18 = ssub.s32 %s13, 1
      %s19 = ssub.s32 %s13, 2
      %s26 = sadd.s32 1, %s21
      %p27 = scmp.ge.s32.totalorder %s26, 1
      %s28 = scalar_select %p27, 0, %s26
      %s29 = sadd.s32 1, %s20
      %s30 = scalar_select %p27, %s29, %s20
      %p31 = scmp.ge.s32.totalorder %s30, 2
      %s32 = scalar_select %p31, 0, %s30
      %s33 = ssub.s32 %s20, %s32
      %s34 = ssub.s32 %s21, %s28
      %s35 = sor.u32 %s33, %s34
      %p36 = scmp.eq.s32.totalorder %s35, 0
      %s38 = sadd.s32 %s37, 1
      %s39 = scalar_select %p36, %s37, %s38
      %p42 = pneg %p36
      %p43 = scmp.eq.s32.totalorder %s13, 1
      %p44 = por %p42, %p43
      %p45 = scmp.ne.s32.totalorder %s37, %s40
      %p46 = scmp.eq.s32.totalorder %s13, 0
      %p47 = por %p45, %p46
      %p48 = scmp.ne.s32.totalorder %s37, %s40
      %p49 = scmp.eq.s32.totalorder %s18, 1
      %p50 = por %p48, %p49
      %p51 = scmp.ne.s32.totalorder %s40, %s41
      %p52 = scmp.eq.s32.totalorder %s18, 0
      %p53 = por %p51, %p52
      %p54 = scmp.ne.s32.totalorder %s40, %s41
      %p55 = scmp.eq.s32.totalorder %s19, 1
      %p56 = por %p54, %p55
      %p58 = scmp.ne.s32.totalorder %s41, %s57
      %p59 = scmp.eq.s32.totalorder %s19, 0
      %p60 = por %p58, %p59
      %s61 = ssub.s32 %s20, %s32
      %s62 = ssub.s32 %s21, %s28
      %s63 = sor.u32 %s61, %s62
      %p64 = scmp.eq.s32.totalorder %s63, 0
      %s66 = sadd.s32 %s65, 1
      %s67 = scalar_select %p64, %s65, %s66
      %p70 = pneg %p64
      %p71 = scmp.eq.s32.totalorder %s13, 1
      %p72 = por %p70, %p71
      %p73 = scmp.ne.s32.totalorder %s65, %s68
      %p74 = scmp.eq.s32.totalorder %s13, 0
      %p75 = por %p73, %p74
      %p76 = scmp.ne.s32.totalorder %s65, %s68
      %p77 = scmp.eq.s32.totalorder %s18, 1
      %p78 = por %p76, %p77
      %p79 = scmp.ne.s32.totalorder %s68, %s69
      %p80 = scmp.eq.s32.totalorder %s18, 0
      %p81 = por %p79, %p80
      %p82 = scmp.ne.s32.totalorder %s68, %s69
      %p83 = scmp.eq.s32.totalorder %s19, 1
      %p84 = por %p82, %p83
      %p86 = scmp.ne.s32.totalorder %s69, %s85
      %p87 = scmp.eq.s32.totalorder %s19, 0
      %p88 = por %p86, %p87
      %p89 = scmp.le.s32.totalorder 1, %s13
      %p90 = scmp.lt.s32.totalorder %s13, 3
      %p91 = pnand %p89, %p90
      %p92 = pneg %p91
      // Predicated region
      $region9: #{tpu_custom_call.1} parent=5 // pred_check
        _
      $region10: #{tpu_custom_call.1} parent=5 // pred_check_branch
        %94 = sbr.rel (%p91) target = $region12
      $region11: #{tpu_custom_call.1} parent=5 // pred_region
        %s95 = ssub.s32 %s13, 1
      $region12: #{tpu_custom_call.1} parent=5 // pred_fallthru
        _
      %p96 = scmp.lt.s32.totalorder %s13, 2
      // Predicated region
      $region13: #{tpu_custom_call.1} parent=5 // pred_check
        %p97 = pneg %p96
      $region14: #{tpu_custom_call.1} parent=5 // pred_check_branch
        %99 = sbr.rel (%p97) target = $region16
      $region15: #{tpu_custom_call.1} parent=5 // pred_region
        // Predicated region
        $region17: #{tpu_custom_call.1} parent=15 // pred_check
          %p100 = pneg %p47
        $region18: #{tpu_custom_call.1} parent=15 // pred_check_branch
          %102 = sbr.rel (%p100) target = $region20
        $region19: #{tpu_custom_call.1} parent=15 // pred_region
          %s103 = sand.u32 %s37, 1
          %s104 = scalar_lea.sflag [#allocation3], %s103
          %s105 = sand.u32 %s37, 1
          %s106 = smul.addr %s105, 6
          %s107 = scalar_lea.vmem [#allocation2], %s106
          %s109 = ssub.s32 96, 96
          %110 = vsyncadd %s104, %s109
          %s111 = smul.addr %s20, 3
          %s112 = sadd.s32 %s21, %s111
          %s113 = smul.addr %s112, 32
          %s114 = scalar_lea.hbm %s0, %s113
          %s115 = sshll.u32 %s107, 4
          %s116 = int_to_ptr.vmem [resolvable:$true] %s115
          %121 = dma.hbm_to_vmem [thread:$0]  %s114, 96, %s116, %s104, 32, 32, 2
        $region20: #{tpu_custom_call.1} parent=15 // pred_fallthru
          _
      $region16: #{tpu_custom_call.1} parent=5 // pred_fallthru
        _
      %p122 = scmp.le.s32.totalorder 1, %s13
      %p123 = scmp.lt.s32.totalorder %s13, 3
      %p124 = pnand %p122, %p123
      %p125 = pneg %p124
      // Predicated region
      $region21: #{tpu_custom_call.1} parent=5 // pred_check
        _
      $region22: #{tpu_custom_call.1} parent=5 // pred_check_branch
        %127 = sbr.rel (%p124) target = $region24
      $region23: #{tpu_custom_call.1} parent=5 // pred_region
        %s128 = ssub.s32 %s13, 1
        %s129 = sand.u32 %s40, 1
        %s130 = scalar_lea.sflag [#allocation3], %s129
        %s131 = sand.u32 %s40, 1
        %s132 = smul.addr %s131, 6
        %s133 = scalar_lea.vmem [#allocation2], %s132
        // Predicated region
        $region25: #{tpu_custom_call.1} parent=23 // pred_check
          %p134 = pneg %p53
        $region26: #{tpu_custom_call.1} parent=23 // pred_check_branch
          %136 = sbr.rel (%p134) target = $region28
        $region27: #{tpu_custom_call.1} parent=23 // pred_region
          %137 = dma.done %s130, 96
        $region28: #{tpu_custom_call.1} parent=23 // pred_fallthru
          _
        %s138 = sand.u32 %s40, 1
        %s139 = scalar_lea.sflag [#allocation3], %s138
        %s140 = sand.u32 %s40, 1
        %s141 = smul.addr %s140, 6
        %s142 = scalar_lea.vmem [#allocation2], %s141
        %p143 = pneg %p53
        %p144 = pneg %p50
        %p145 = pneg %p81
        %p146 = pneg %p78
        %s147 = sand.u32 %s68, 1
        %s148 = scalar_lea.sflag [#allocation4], %s147
        %s149 = sand.u32 %s68, 1
        %s150 = smul.addr %s149, 6
        %s151 = scalar_lea.vmem [#allocation5], %s150
        %v152 = vld [vmem:[%s133] sm:$0x3]
        %s153 = scalar_lea.vmem %s133, 2 [#allocation2]
        %v154 = vld [vmem:[%s153] sm:$0x3]
        %s155 = scalar_lea.vmem %s133, 4 [#allocation2]
        %v156 = vld [vmem:[%s155] sm:$0x3]
        %v157 = vmax.f32 %v156, %v154
        %v158 = vmax.f32 %v157, %v152
        %v159 = vmin.f32 %v156, %v154
        %v160 = vmin.f32 %v159, %v152
        %v161 = vsub.f32 %v158, %v160
        %v162 = vadd.f32 %v161, 1e-08
        %v163 = vrcp.pop %v162
        %v164 = vmul.f32 0.16666667, %v163
        %v165 = vsub.f32 %v156, %v154
        %v166 = vmul.f32 %v165, %v164
        %v167 = vadd.f32 %v166, 0.6666667
        %vm168 = vcmp.eq.f32.partialorder %v154, %v158
        %v169 = vsub.f32 %v152, %v156
        %v170 = vmul.f32 %v169, %v164
        %v171 = vadd.f32 %v170, 0.33333334
        %v172 = vsel %vm168, %v171, %v167
        %v173 = vsub.f32 %v154, %v152
        %v174 = vmul.f32 %v173, %v164
        %vm175 = vcmp.eq.f32.partialorder %v156, %v158
        %vm176 = vcmp.lt.f32.partialorder %v174, 0.0
        %v177 = vadd.f32 %v174, 1.0
        %v178 = vsel %vm176, %v177, %v174
        %v179 = vsel %vm175, %v178, %v172
        %vm180 = vcmp.eq.f32.partialorder %v160, %v158
        %v181 = vsel %vm180, 0.0, %v179
        %v182 = vadd.f32 %v158, 1e-08
        %v183 = vrcp.pop %v182
        %v184 = vmul.f32 %v161, %v183
        %vm185 = vcmp.eq.f32.partialorder %v158, 0.0
        %v186 = vsel %vm185, 0.0, %v184
        %187 = vst [vmem:[%s151] sm:$0x3] %v181
        %s188 = scalar_lea.vmem %s151, 2 [#allocation5]
        %189 = vst [vmem:[%s188] sm:$0x3] %v186
        %s190 = scalar_lea.vmem %s151, 4 [#allocation5]
        %191 = vst [vmem:[%s190] sm:$0x3] %v158
        %s192 = sand.u32 %s68, 1
        %s193 = scalar_lea.sflag [#allocation4], %s192
        %s194 = sand.u32 %s68, 1
        %s195 = smul.addr %s194, 6
        %s196 = scalar_lea.vmem [#allocation5], %s195
        // Predicated region
        $region29: #{tpu_custom_call.1} parent=23 // pred_check
          %p197 = pneg %p78
        $region30: #{tpu_custom_call.1} parent=23 // pred_check_branch
          %199 = sbr.rel (%p197) target = $region32
        $region31: #{tpu_custom_call.1} parent=23 // pred_region
          %s201 = ssub.s32 96, 96
          %202 = vsyncadd %s193, %s201
          %s203 = smul.addr %s22, 3
          %s204 = sadd.s32 %s23, %s203
          %s205 = smul.addr %s204, 32
          %s206 = scalar_lea.hbm %s1, %s205
          %s207 = sshll.u32 %s196, 4
          %s208 = int_to_ptr.vmem [resolvable:$true] %s207
          %213 = dma.vmem_to_hbm [thread:$0]  %s208, 96, %s206, %s193, 32, 32, 2
        $region32: #{tpu_custom_call.1} parent=23 // pred_fallthru
          _
      $region24: #{tpu_custom_call.1} parent=5 // pred_fallthru
        _
      %p214 = scmp.le.s32.totalorder 2, %s13
      // Predicated region
      $region33: #{tpu_custom_call.1} parent=5 // pred_check
        %p215 = pneg %p214
      $region34: #{tpu_custom_call.1} parent=5 // pred_check_branch
        %217 = sbr.rel (%p215) target = $region36
      $region35: #{tpu_custom_call.1} parent=5 // pred_region
        %s218 = ssub.s32 %s13, 2
        // Predicated region
        $region37: #{tpu_custom_call.1} parent=35 // pred_check
          %p219 = pneg %p84
        $region38: #{tpu_custom_call.1} parent=35 // pred_check_branch
          %221 = sbr.rel (%p219) target = $region40
        $region39: #{tpu_custom_call.1} parent=35 // pred_region
          %s222 = sand.u32 %s69, 1
          %s223 = scalar_lea.sflag [#allocation4], %s222
          %s224 = sand.u32 %s69, 1
          %s225 = smul.addr %s224, 6
          %s226 = scalar_lea.vmem [#allocation5], %s225
          %227 = dma.done %s223, 96
        $region40: #{tpu_custom_call.1} parent=35 // pred_fallthru
          _
      $region36: #{tpu_custom_call.1} parent=5 // pred_fallthru
        _
    $region6: #{tpu_custom_call.1} parent=1 // loop_footer
      %s17 = sadd.s32 1, %s13
    $region7: #{tpu_custom_call.1} parent=1 // loop_footer_branch
      %12 = sbr.rel target = $region3
    $region8: #{tpu_custom_call.1} parent=1 // loop_exit
      _
    %228 = vsyncpa [#allocation3], 1
    %s229 = scalar_lea.sflag [#allocation3], 1
    %230 = vsyncpa %s229, 1
    %231 = vsyncpa [#allocation4], 1
    %s232 = scalar_lea.sflag [#allocation4], 1
    %233 = vsyncpa %s232, 1

</llo_original>
